<compile_context>
chip_gen: v5e
topology: v5e:2x2
jax: 0.10.0
libtpu: 0.0.40
codegen_flags: <defaults>
</compile_context>

<pallas_src>
import functools

import jax
import jax.numpy as jnp
from jax import lax
from jax.experimental import pallas as pl
from jax.experimental.pallas import tpu as pltpu

NEG_INF = -1.0e30  # effectively -inf for softmax masking (exp underflows to 0)


def _nce_kernel(zrow_ref, zcol_ref, zpart_ref, idc_ref, idr_ref, o_ref,
                m_sc, l_sc, *, temperature, use_intent, block_rows,
                block_cols, half):
    i = pl.program_id(0)
    k = pl.program_id(1)
    nk = pl.num_programs(1)
    inv_t = jnp.float32(1.0 / temperature)

    @pl.when(k == 0)
    def _init():
        m_sc[...] = jnp.full_like(m_sc, NEG_INF)
        l_sc[...] = jnp.zeros_like(l_sc)

    # Fold the temperature into the small (tm, D) row operand only.
    zr_f32 = zrow_ref[...].astype(jnp.float32) * inv_t
    zr = zr_f32.astype(zcol_ref.dtype)

    # G block = zr @ zcol^T via dim-1/dim-1 contraction: no transpose is
    # materialized, the MXU consumes the (tn, D) column block directly.
    g = lax.dot_general(zr, zcol_ref[...], (((1,), (1,)), ((), ())),
                        preferred_element_type=jnp.float32)        # (tm, tn)

    row0 = i * block_rows
    col0 = k * block_cols
    diff = (lax.broadcasted_iota(jnp.int32, g.shape, 0) + row0) - \
           (lax.broadcasted_iota(jnp.int32, g.shape, 1) + col0)

    if use_intent:
        # Same-intent pairs are masked negatives except the target position
        # |row - col| == B (never masked in the reference: sim11/sim22 masked
        # with ids==ids.T incl. diag, sim12/sim21 with (ids==ids.T) & ~eye).
        same_intent = idc_ref[...] == idr_ref[...]                  # (tm,1)==(1,tn)
        neg_mask = jnp.logical_and(same_intent, jnp.abs(diff) != half)
    else:
        # Only the self-similarity diagonal of sim11 / sim22, i.e. diag(G).
        neg_mask = diff == 0

    g = jnp.where(neg_mask, NEG_INF, g)

    # Online logsumexp across column blocks.
    m_prev = m_sc[...]
    m_new = jnp.maximum(m_prev, jnp.max(g, axis=-1, keepdims=True))
    l_sc[...] = (l_sc[...] * jnp.exp(m_prev - m_new) +
                 jnp.sum(jnp.exp(g - m_new), axis=-1, keepdims=True))
    m_sc[...] = m_new

    @pl.when(k == nk - 1)
    def _finalize():
        # Target logit via a direct (tm, D) dot with the partner row block of
        # Z: O(tm*D) instead of an O(tm*2B) masked select + XLU reduce.
        tgt = jnp.sum(zr_f32 * zpart_ref[...].astype(jnp.float32),
                      axis=-1, keepdims=True)
        o_ref[...] = (m_sc[...] + jnp.log(l_sc[...])) - tgt


def _row_tile_preference():
    """v5e's MXU is 128-wide in M, so tm>128 only adds vreg pressure there."""
    try:
        kind = jax.devices()[0].device_kind.lower()
    except Exception:
        return 256
    if ("v5 lite" in kind) or ("v5e" in kind) or ("v5lite" in kind):
        return 128
    return 256


def _pick_row_tile(batch, prefer):
    for tm in (256, 128, 64, 32, 16, 8):
        if tm <= prefer and batch % tm == 0:
            return tm
    # TODO(synk): add a masked-sum target fallback for batch sizes that are
    # not a multiple of 8 (row blocks must be sublane-aligned and must not
    # straddle the x1/x2 boundary for the partner-row target trick).
    raise NotImplementedError(
        "NCELoss Pallas kernel requires the batch size to be a multiple of 8.")


def _pick_col_tile(n_cols):
    for tn in (1024, 512, 256, 128):
        if n_cols % tn == 0:
            return tn
    return n_cols  # small N: one full-width column block (full-extent dims OK)


def _vmem_limit_bytes(tm, tn, d, mm_itemsize):
    needed = (2 * tm * d * mm_itemsize       # row block (double buffered)
              + 2 * tm * d * mm_itemsize     # partner block
              + 2 * tn * d * mm_itemsize     # column block
              + 2 * (tm + tn) * 4            # intent ids
              + 4 * tm * 4                   # output block + m/l scratch
              + 4 * tm * tn * 4)             # live (tm, tn) f32 temporaries
    try:
        cap = pltpu.get_tpu_info().vmem_capacity_bytes
    except Exception:
        cap = 64 * 1024 * 1024               # conservative (v7x per-TC VMEM)
    limit = max(32 * 1024 * 1024, 3 * needed + (16 << 20))
    return int(min(limit, cap * 3 // 4))


def nce_loss(batch_sample_one, batch_sample_two, temperature, intent_ids=None,
             *, matmul_dtype=jnp.bfloat16, block_rows=None, block_cols=None):
    """Pallas implementation of NCELoss.forward. Returns a scalar f32 loss."""
    B, D = batch_sample_one.shape
    N = 2 * B
    use_intent = intent_ids is not None

    # Wrapper-side layout plumbing (O(N*D), negligible vs O(N^2*D) compute):
    # stacked Z, MXU-dtype copy, intent ids in both column and row layouts.
    z = jnp.concatenate([batch_sample_one, batch_sample_two],
                        axis=0).astype(jnp.float32)                 # (N, D)
    z_mm = z.astype(matmul_dtype)
    if use_intent:
        ids = jnp.asarray(intent_ids, jnp.int32).reshape(-1)
        full_ids = jnp.concatenate([ids, ids], axis=0)
    else:
        full_ids = jnp.zeros((N,), jnp.int32)  # unused placeholder
    ids_col = full_ids.reshape(N, 1)
    ids_row = full_ids.reshape(1, N)

    tm = block_rows if block_rows is not None else _pick_row_tile(
        B, _row_tile_preference())
    tn = block_cols if block_cols is not None else _pick_col_tile(N)
    if B % tm != 0 or N % tn != 0:
        raise ValueError(f"tile sizes must divide the problem: B={B}, N={N}, "
                         f"tm={tm}, tn={tn}")

    n_row_blocks = N // tm          # always even (tm | B), balanced on v7x
    half_blocks = B // tm
    n_col_blocks = N // tn
    grid = (n_row_blocks, n_col_blocks)

    def _partner_map(i, k, hb=half_blocks, nb=n_row_blocks):
        return ((i + hb) % nb, 0)

    kernel = functools.partial(
        _nce_kernel, temperature=float(temperature), use_intent=use_intent,
        block_rows=tm, block_cols=tn, half=B)

    per_row = pl.pallas_call(
        kernel,
        out_shape=jax.ShapeDtypeStruct((N, 1), jnp.float32),
        grid_spec=pltpu.PrefetchScalarGridSpec(
            num_scalar_prefetch=0,
            grid=grid,
            in_specs=[
                pl.BlockSpec((tm, D), lambda i, k: (i, 0)),   # row block of Z
                pl.BlockSpec((tn, D), lambda i, k: (k, 0)),   # column block of Z
                pl.BlockSpec((tm, D), _partner_map),          # partner row block
                pl.BlockSpec((tm, 1), lambda i, k: (i, 0)),   # intent ids (rows)
                pl.BlockSpec((1, tn), lambda i, k: (0, k)),   # intent ids (cols)
            ],
            out_specs=pl.BlockSpec((tm, 1), lambda i, k: (i, 0)),
            scratch_shapes=[pltpu.VMEM((tm, 1), jnp.float32),   # running max
                            pltpu.VMEM((tm, 1), jnp.float32)],  # running sum
        ),
        compiler_params=pltpu.CompilerParams(
            dimension_semantics=("parallel", "arbitrary"),
            vmem_limit_bytes=_vmem_limit_bytes(
                tm, tn, D, jnp.dtype(matmul_dtype).itemsize),
        ),
    )(z_mm, z_mm, z_mm, ids_col, ids_row)

    # CrossEntropyLoss default reduction: mean over the 2B rows.
    return jnp.sum(per_row) / jnp.float32(N)


def nce_loss_ref(x1, x2, temperature, intent_ids=None):
    """Pure-JAX reference matching the PyTorch module exactly."""
    sim11 = (x1 @ x1.T) / temperature
    sim22 = (x2 @ x2.T) / temperature
    sim12 = (x1 @ x2.T) / temperature
    d = sim12.shape[-1]
    eye = jnp.eye(d, dtype=bool)
    if intent_ids is not None:
        ids = intent_ids.reshape(-1, 1)
        mask = ids == ids.T
        sim11 = jnp.where(mask, -jnp.inf, sim11)
        sim22 = jnp.where(mask, -jnp.inf, sim22)
        sim12 = jnp.where(mask & ~eye, -jnp.inf, sim12)
    else:
        sim11 = jnp.where(eye, -jnp.inf, sim11)
        sim22 = jnp.where(eye, -jnp.inf, sim22)
    r1 = jnp.concatenate([sim12, sim11], axis=-1)
    r2 = jnp.concatenate([sim22, sim12.T], axis=-1)
    logits = jnp.concatenate([r1, r2], axis=0)
    labels = jnp.arange(2 * d)
    logp = jax.nn.log_softmax(logits, axis=-1)
    return -jnp.mean(logp[jnp.arange(2 * d), labels])


if __name__ == "__main__":
    temperature = 0.5
    k1, k2, k3, k4, k5, k6 = jax.random.split(jax.random.PRNGKey(0), 6)

    # Case A: tiny shapes (single column block per row block).
    B, D = 8, 32
    x1 = jax.random.normal(k1, (B, D), dtype=jnp.float32)
    x2 = jax.random.normal(k2, (B, D), dtype=jnp.float32)
    intent_ids = jax.random.randint(k3, (B,), 0, 3, dtype=jnp.int32)

    for iid in (None, intent_ids):
        # f32 MXU path: tight check against the reference.
        out = jax.block_until_ready(
            nce_loss(x1, x2, temperature, iid, matmul_dtype=jnp.float32))
        ref = nce_loss_ref(x1, x2, temperature, iid)
        assert jnp.allclose(out, ref, atol=1e-4, rtol=1e-5), (out, ref)

        # bf16 MXU path (performance default): loose tolerance.
        out_bf = jax.block_until_ready(nce_loss(x1, x2, temperature, iid))
        assert jnp.allclose(out_bf, ref, atol=2e-1, rtol=3e-2), (out_bf, ref)

    # Case B: exercises the multi-block online-logsumexp path (grid (2, 2)).
    B2, D2 = 128, 64
    y1 = jax.random.normal(k4, (B2, D2), dtype=jnp.float32)
    y2 = jax.random.normal(k5, (B2, D2), dtype=jnp.float32)
    ids2 = jax.random.randint(k6, (B2,), 0, 8, dtype=jnp.int32)
    out = jax.block_until_ready(
        nce_loss(y1, y2, temperature, ids2, matmul_dtype=jnp.float32))
    ref = nce_loss_ref(y1, y2, temperature, ids2)
    assert jnp.allclose(out, ref, atol=1e-4, rtol=1e-5), (out, ref)

    print("KERNEL_OK")
</pallas_src>

<mosaic_0001>
module attributes {stable_mosaic.version = 11 : i64} {
  func.func @_nce_kernel(%arg0: i32, %arg1: i32, %arg2: memref<8x32xf32, #tpu.memory_space<vmem>>, %arg3: memref<16x32xf32, #tpu.memory_space<vmem>>, %arg4: memref<8x32xf32, #tpu.memory_space<vmem>>, %arg5: memref<8x1xi32, #tpu.memory_space<vmem>>, %arg6: memref<1x16xi32, #tpu.memory_space<vmem>>, %arg7: memref<8x1xf32, #tpu.memory_space<vmem>>, %arg8: memref<8x1xf32, #tpu.memory_space<vmem>>, %arg9: memref<8x1xf32, #tpu.memory_space<vmem>>) attributes {dimension_semantics = [#tpu.dimension_semantics<parallel>, #tpu.dimension_semantics<arbitrary>], iteration_bounds = array<i64: 2, 1>, scalar_prefetch = 0 : i64, scratch_operands = 2 : i64, tpu.core_type = #tpu.core_type<tc>, window_params = [{transform_indices = @transform_0, window_bounds = array<i64: 8, 32>}, {transform_indices = @transform_1, window_bounds = array<i64: 16, 32>}, {transform_indices = @transform_2, window_bounds = array<i64: 8, 32>}, {transform_indices = @transform_3, window_bounds = array<i64: 8, 1>}, {transform_indices = @transform_4, window_bounds = array<i64: 1, 16>}, {transform_indices = @transform_5, window_bounds = array<i64: 8, 1>}]} {
    %c0_i32 = arith.constant 0 : i32
    %0 = arith.cmpi eq, %arg1, %c0_i32 : i32
    %1 = arith.extui %0 : i1 to i32
    %c0_i32_0 = arith.constant 0 : i32
    %2 = arith.cmpi ne, %1, %c0_i32_0 : i32
    scf.if %2 {
      %cst_19 = arith.constant -1.000000e+30 : f32
      %40 = vector.broadcast %cst_19 : f32 to vector<8x1xf32>
      %c0_20 = arith.constant 0 : index
      %c0_21 = arith.constant 0 : index
      %41 = vector.load %arg8[%c0_20, %c0_21] : memref<8x1xf32, #tpu.memory_space<vmem>>, vector<8x1xf32>
      tpu.vector_store %arg8[%c0_20, %c0_21], %40 {strides = array<i32>} : memref<8x1xf32, #tpu.memory_space<vmem>>, vector<8x1xf32>,
      %cst_22 = arith.constant 0.000000e+00 : f32
      %42 = vector.broadcast %cst_22 : f32 to vector<8x1xf32>
      %c0_23 = arith.constant 0 : index
      %c0_24 = arith.constant 0 : index
      %43 = vector.load %arg9[%c0_23, %c0_24] : memref<8x1xf32, #tpu.memory_space<vmem>>, vector<8x1xf32>
      tpu.vector_store %arg9[%c0_23, %c0_24], %42 {strides = array<i32>} : memref<8x1xf32, #tpu.memory_space<vmem>>, vector<8x1xf32>,
    } else {
    }
    %c0 = arith.constant 0 : index
    %c0_1 = arith.constant 0 : index
    %3 = vector.load %arg2[%c0, %c0_1] : memref<8x32xf32, #tpu.memory_space<vmem>>, vector<8x32xf32>
    %cst = arith.constant 2.000000e+00 : f32
    %4 = vector.broadcast %cst : f32 to vector<8x32xf32>
    %5 = arith.mulf %3, %4 : vector<8x32xf32>
    %c0_2 = arith.constant 0 : index
    %c0_3 = arith.constant 0 : index
    %6 = vector.load %arg3[%c0_2, %c0_3] : memref<16x32xf32, #tpu.memory_space<vmem>>, vector<16x32xf32>
    %cst_4 = arith.constant dense<0.000000e+00> : vector<8x16xf32>
    %7 = tpu.matmul %5, %6, %cst_4 {dimension_numbers = #tpu.dot_dimension_numbers<[1], [1], [0], [0], [0, 0, 1, 0], [], []>} : vector<8x32xf32>, vector<16x32xf32>, vector<8x16xf32> -> vector<8x16xf32>
    %c8_i32 = arith.constant 8 : i32
    %8 = arith.muli %arg0, %c8_i32 : i32
    %c16_i32 = arith.constant 16 : i32
    %9 = arith.muli %arg1, %c16_i32 : i32
    %10 = tpu.iota {dimensions = array<i32: 0>} : vector<8x16xi32>
    %11 = vector.broadcast %8 : i32 to vector<8x16xi32>
    %12 = arith.addi %10, %11 : vector<8x16xi32>
    %13 = tpu.iota {dimensions = array<i32: 1>} : vector<8x16xi32>
    %14 = vector.broadcast %9 : i32 to vector<8x16xi32>
    %15 = arith.addi %13, %14 : vector<8x16xi32>
    %16 = arith.subi %12, %15 : vector<8x16xi32>
    %c0_i32_5 = arith.constant 0 : i32
    %17 = vector.broadcast %c0_i32_5 : i32 to vector<8x16xi32>
    %18 = arith.cmpi eq, %16, %17 : vector<8x16xi32>
    %cst_6 = arith.constant -1.000000e+30 : f32
    %19 = vector.broadcast %cst_6 : f32 to vector<8x16xf32>
    %20 = arith.select %18, %19, %7 : vector<8x16xi1>, vector<8x16xf32>
    %c0_7 = arith.constant 0 : index
    %c0_8 = arith.constant 0 : index
    %21 = vector.load %arg8[%c0_7, %c0_8] : memref<8x1xf32, #tpu.memory_space<vmem>>, vector<8x1xf32>
    %cst_9 = arith.constant dense<0xFF800000> : vector<8xf32>
    %22 = vector.multi_reduction <maximumf>, %20, %cst_9 [1] : vector<8x16xf32> to vector<8xf32>
    %23 = vector.shape_cast %22 : vector<8xf32> to vector<8x1xf32>
    %24 = arith.maximumf %21, %23 : vector<8x1xf32>
    %c0_10 = arith.constant 0 : index
    %c0_11 = arith.constant 0 : index
    %25 = vector.load %arg9[%c0_10, %c0_11] : memref<8x1xf32, #tpu.memory_space<vmem>>, vector<8x1xf32>
    %26 = arith.subf %21, %24 : vector<8x1xf32>
    %27 = math.exp %26 : vector<8x1xf32>
    %28 = arith.mulf %25, %27 : vector<8x1xf32>
    %29 = vector.broadcast %24 : vector<8x1xf32> to vector<8x16xf32>
    %30 = arith.subf %20, %29 : vector<8x16xf32>
    %31 = math.exp %30 : vector<8x16xf32>
    %cst_12 = arith.constant dense<0.000000e+00> : vector<8xf32>
    %32 = vector.multi_reduction <add>, %31, %cst_12 [1] : vector<8x16xf32> to vector<8xf32>
    %33 = vector.shape_cast %32 : vector<8xf32> to vector<8x1xf32>
    %34 = arith.addf %28, %33 : vector<8x1xf32>
    %c0_13 = arith.constant 0 : index
    %c0_14 = arith.constant 0 : index
    %35 = vector.load %arg9[%c0_13, %c0_14] : memref<8x1xf32, #tpu.memory_space<vmem>>, vector<8x1xf32>
    tpu.vector_store %arg9[%c0_13, %c0_14], %34 {strides = array<i32>} : memref<8x1xf32, #tpu.memory_space<vmem>>, vector<8x1xf32>,
    %c0_15 = arith.constant 0 : index
    %c0_16 = arith.constant 0 : index
    %36 = vector.load %arg8[%c0_15, %c0_16] : memref<8x1xf32, #tpu.memory_space<vmem>>, vector<8x1xf32>
    tpu.vector_store %arg8[%c0_15, %c0_16], %24 {strides = array<i32>} : memref<8x1xf32, #tpu.memory_space<vmem>>, vector<8x1xf32>,
    %c0_i32_17 = arith.constant 0 : i32
    %37 = arith.cmpi eq, %arg1, %c0_i32_17 : i32
    %38 = arith.extui %37 : i1 to i32
    %c0_i32_18 = arith.constant 0 : i32
    %39 = arith.cmpi ne, %38, %c0_i32_18 : i32
    scf.if %39 {
      %c0_19 = arith.constant 0 : index
      %c0_20 = arith.constant 0 : index
      %40 = vector.load %arg4[%c0_19, %c0_20] : memref<8x32xf32, #tpu.memory_space<vmem>>, vector<8x32xf32>
      %41 = arith.mulf %5, %40 : vector<8x32xf32>
      %cst_21 = arith.constant dense<0.000000e+00> : vector<8xf32>
      %42 = vector.multi_reduction <add>, %41, %cst_21 [1] : vector<8x32xf32> to vector<8xf32>
      %43 = vector.shape_cast %42 : vector<8xf32> to vector<8x1xf32>
      %c0_22 = arith.constant 0 : index
      %c0_23 = arith.constant 0 : index
      %44 = vector.load %arg8[%c0_22, %c0_23] : memref<8x1xf32, #tpu.memory_space<vmem>>, vector<8x1xf32>
      %c0_24 = arith.constant 0 : index
      %c0_25 = arith.constant 0 : index
      %45 = vector.load %arg9[%c0_24, %c0_25] : memref<8x1xf32, #tpu.memory_space<vmem>>, vector<8x1xf32>
      %46 = math.log %45 : vector<8x1xf32>
      %47 = arith.addf %44, %46 : vector<8x1xf32>
      %48 = arith.subf %47, %43 : vector<8x1xf32>
      %c0_26 = arith.constant 0 : index
      %c0_27 = arith.constant 0 : index
      %49 = vector.load %arg7[%c0_26, %c0_27] : memref<8x1xf32, #tpu.memory_space<vmem>>, vector<8x1xf32>
      tpu.vector_store %arg7[%c0_26, %c0_27], %48 {strides = array<i32>} : memref<8x1xf32, #tpu.memory_space<vmem>>, vector<8x1xf32>,
    } else {
    }
    return
  }
  func.func @transform_0(%arg0: i32, %arg1: i32) -> (i32, i32) {
    %c0_i32 = arith.constant 0 : i32
    %c0_i32_0 = arith.constant 0 : i32
    return %arg0, %c0_i32 : i32, i32
  }
  func.func @transform_1(%arg0: i32, %arg1: i32) -> (i32, i32) {
    %c0_i32 = arith.constant 0 : i32
    %c0_i32_0 = arith.constant 0 : i32
    return %arg1, %c0_i32 : i32, i32
  }
  func.func @transform_2(%arg0: i32, %arg1: i32) -> (i32, i32) {
    %c1_i32 = arith.constant 1 : i32
    %0 = arith.addi %arg0, %c1_i32 : i32
    %c2_i32 = arith.constant 2 : i32
    %c0_i32 = arith.constant 0 : i32
    %1 = arith.cmpi eq, %c2_i32, %c0_i32 : i32
    %c1_i32_0 = arith.constant 1 : i32
    %2 = arith.select %1, %c1_i32_0, %c2_i32 : i32
    %3 = arith.remsi %0, %2 : i32
    %c0_i32_1 = arith.constant 0 : i32
    %4 = arith.cmpi ne, %3, %c0_i32_1 : i32
    %c0_i32_2 = arith.constant 0 : i32
    %5 = arith.cmpi slt, %3, %c0_i32_2 : i32
    %c0_i32_3 = arith.constant 0 : i32
    %6 = arith.cmpi slt, %2, %c0_i32_3 : i32
    %7 = arith.xori %5, %6 : i1
    %8 = arith.andi %7, %4 : i1
    %9 = arith.addi %3, %2 : i32
    %10 = arith.select %8, %9, %3 : i32
    %c0_i32_4 = arith.constant 0 : i32
    %c0_i32_5 = arith.constant 0 : i32
    return %10, %c0_i32_4 : i32, i32
  }
  func.func @transform_3(%arg0: i32, %arg1: i32) -> (i32, i32) {
    %c0_i32 = arith.constant 0 : i32
    %c0_i32_0 = arith.constant 0 : i32
    return %arg0, %c0_i32 : i32, i32
  }
  func.func @transform_4(%arg0: i32, %arg1: i32) -> (i32, i32) {
    %c0_i32 = arith.constant 0 : i32
    %c0_i32_0 = arith.constant 0 : i32
    return %c0_i32, %arg1 : i32, i32
  }
  func.func @transform_5(%arg0: i32, %arg1: i32) -> (i32, i32) {
    %c0_i32 = arith.constant 0 : i32
    %c0_i32_0 = arith.constant 0 : i32
    return %arg0, %c0_i32 : i32, i32
  }
}

</mosaic_0001>

<llo_original>
// kernel: tpu_custom_call.1
$region0: #{tpu_custom_call.1}
  #allocation0 [shape = 'u32[]', space=smem, size = 0x4, offset = 0x4, fixed_abs, tag = 'smem constant byte address 0x4 - core index']
  #allocation1 [shape = 'u32[72,128]{1,0:T(1,128)}', space=vmem, size = 0x9000, scoped, tag = 'internal scratch']
  #allocation2 [shape = 'f32[8,1]{1,0:T(8,128)}', space=vmem, size = 0x1000, scoped, tag = 'scratch operand']
  #allocation3 [shape = 'f32[8,1]{1,0:T(8,128)}', space=vmem, size = 0x1000, scoped, tag = 'scratch operand']
  %s0 = inlined_call_operand.vmem [shape: f32[16,32], index: 0, kind: input, shape index: {}]
  %s1 = inlined_call_operand.hbm [shape: f32[16,32], index: 1, kind: input, shape index: {}]
  %s2 = inlined_call_operand.hbm [shape: f32[16,32], index: 2, kind: input, shape index: {}]
  %s3 = inlined_call_operand.vmem [shape: s32[16,1], index: 3, kind: input, shape index: {}]
  %s4 = inlined_call_operand.vmem [shape: s32[1,16], index: 4, kind: input, shape index: {}]
  %s5 = inlined_call_operand.vmem [shape: f32[16,1], index: 5, kind: output, shape index: {}]
  %s6 = sld [smem:[#allocation0]]
  $region69: #{tpu_custom_call.1} parent=0
    _
  %s8 = ssub.s32 1, %s6
  %s9 = scalar_select 0, %s8, %s6
  $region1: #{tpu_custom_call.1} parent=0
    #allocation4 [shape = 'u8[8192]{0}', space=vmem, size = 0x2000, scoped, tag = 'input window, operand 1, single buffered']
    #allocation5 [shape = 's32[2]{0}', space=sflag, size = 0x8, scoped, tag = 'scoped memory for tpu_custom_call.1']
    #allocation6 [shape = 'u8[8192]{0}', space=vmem, size = 0x2000, scoped, tag = 'input window, operand 2']
    #allocation7 [shape = 's32[2]{0}', space=sflag, size = 0x8, scoped, tag = 'scoped memory for tpu_custom_call.1']
    %10 = vsyncpa [#allocation5], 0
    %11 = vsyncpa [#allocation7], 0
    %s12 = scalar_lea.sflag [#allocation7], 1
    %13 = vsyncpa %s12, 0
    loop: start=0, step=1, limit=4
    $region2: #{tpu_custom_call.1} parent=1 // loop_pre_header
      _
    $region3: #{tpu_custom_call.1} parent=1 // loop_header
      %s15 = sphi 0, %s19
      %p16 = scmp.ge.s32.totalorder %s15, 4
      %s22 = sphi 0, %s34
      %s23 = sphi 0, %s30
      %s24 = sphi 0, %s22
      %s25 = sphi 0, %s23
      %s26 = sphi 0, %s24
      %s27 = sphi 0, %s25
      %s37 = sphi 0, %s39
      %s40 = sphi 0, %s37
      %s41 = sphi 0, %s40
      %s57 = sphi 0, %s41
      %s63 = sphi 0, %s65
      %s66 = sphi 0, %s63
      %s67 = sphi 0, %s66
      %s83 = sphi 0, %s67
      %s115 = sphi 0, %s117
      %s118 = sphi 0, %s115
      %s119 = sphi 0, %s118
      %s135 = sphi 0, %s119
      %s141 = sphi 0, %s143
      %s144 = sphi 0, %s141
      %s145 = sphi 0, %s144
      %s161 = sphi 0, %s145
      %s167 = sphi 0, %s169
      %s170 = sphi 0, %s167
      %s171 = sphi 0, %s170
      %s187 = sphi 0, %s171
      %s193 = sphi 0, %s195
      %s196 = sphi 0, %s193
      %s197 = sphi 0, %s196
      %s213 = sphi 0, %s197
    $region4: #{tpu_custom_call.1} parent=1 // loop_header_branch
      %18 = sbr.rel (%p16) target = $region8
    $region5: #{tpu_custom_call.1} parent=1 // loop_body
      %s20 = ssub.s32 %s15, 1
      %s21 = ssub.s32 %s15, 2
      %s28 = sadd.s32 1, %s23
      %p29 = scmp.ge.s32.totalorder %s28, 1
      %s30 = scalar_select %p29, 0, %s28
      %s31 = sadd.s32 1, %s22
      %s32 = scalar_select %p29, %s31, %s22
      %p33 = scmp.ge.s32.totalorder %s32, 2
      %s34 = scalar_select %p33, 0, %s32
      %s35 = ssub.s32 %s22, %s34
      %p36 = scmp.eq.s32.totalorder %s35, 0
      %s38 = sadd.s32 %s37, 1
      %s39 = scalar_select %p36, %s37, %s38
      %p42 = pneg %p36
      %p43 = scmp.eq.s32.totalorder %s15, 1
      %p44 = por %p42, %p43
      %p45 = scmp.ne.s32.totalorder %s37, %s40
      %p46 = scmp.eq.s32.totalorder %s15, 0
      %p47 = por %p45, %p46
      %p48 = scmp.ne.s32.totalorder %s37, %s40
      %p49 = scmp.eq.s32.totalorder %s20, 1
      %p50 = por %p48, %p49
      %p51 = scmp.ne.s32.totalorder %s40, %s41
      %p52 = scmp.eq.s32.totalorder %s20, 0
      %p53 = por %p51, %p52
      %p54 = scmp.ne.s32.totalorder %s40, %s41
      %p55 = scmp.eq.s32.totalorder %s21, 1
      %p56 = por %p54, %p55
      %p58 = scmp.ne.s32.totalorder %s41, %s57
      %p59 = scmp.eq.s32.totalorder %s21, 0
      %p60 = por %p58, %p59
      %s61 = ssub.s32 %s23, %s30
      %p62 = scmp.eq.s32.totalorder %s61, 0
      %s64 = sadd.s32 %s63, 1
      %s65 = scalar_select %p62, %s63, %s64
      %p68 = pneg %p62
      %p69 = scmp.eq.s32.totalorder %s15, 1
      %p70 = por %p68, %p69
      %p71 = scmp.ne.s32.totalorder %s63, %s66
      %p72 = scmp.eq.s32.totalorder %s15, 0
      %p73 = por %p71, %p72
      %p74 = scmp.ne.s32.totalorder %s63, %s66
      %p75 = scmp.eq.s32.totalorder %s20, 1
      %p76 = por %p74, %p75
      %p77 = scmp.ne.s32.totalorder %s66, %s67
      %p78 = scmp.eq.s32.totalorder %s20, 0
      %p79 = por %p77, %p78
      %p80 = scmp.ne.s32.totalorder %s66, %s67
      %p81 = scmp.eq.s32.totalorder %s21, 1
      %p82 = por %p80, %p81
      %p84 = scmp.ne.s32.totalorder %s67, %s83
      %p85 = scmp.eq.s32.totalorder %s21, 0
      %p86 = por %p84, %p85
      %s87 = sadd.s32 %s22, 1
      %p88 = scmp.lt.s32.totalorder %s87, 0
      %s89 = ssub.s32 0, %s87
      %s90 = scalar_select %p88, %s89, %s87
      %s91 = sand.u32 %s90, 1
      %s92 = ssub.s32 0, %s91
      %s93 = scalar_select %p88, %s92, %s91
      %p94 = scmp.ne.s32.totalorder %s93, 0
      %p95 = scmp.lt.s32.totalorder %s93, 0
      %p96 = pnand %p95, %p94
      %p97 = pneg %p96
      %s98 = sadd.s32 %s93, 2
      %s99 = scalar_select %p97, %s98, %s93
      %s100 = sadd.s32 %s34, 1
      %p101 = scmp.lt.s32.totalorder %s100, 0
      %s102 = ssub.s32 0, %s100
      %s103 = scalar_select %p101, %s102, %s100
      %s104 = sand.u32 %s103, 1
      %s105 = ssub.s32 0, %s104
      %s106 = scalar_select %p101, %s105, %s104
      %p107 = scmp.ne.s32.totalorder %s106, 0
      %p108 = scmp.lt.s32.totalorder %s106, 0
      %p109 = pnand %p108, %p107
      %p110 = pneg %p109
      %s111 = sadd.s32 %s106, 2
      %s112 = scalar_select %p110, %s111, %s106
      %s113 = ssub.s32 %s99, %s112
      %p114 = scmp.eq.s32.totalorder %s113, 0
      %s116 = sadd.s32 %s115, 1
      %s117 = scalar_select %p114, %s115, %s116
      %p120 = pneg %p114
      %p121 = scmp.eq.s32.totalorder %s15, 1
      %p122 = por %p120, %p121
      %p123 = scmp.ne.s32.totalorder %s115, %s118
      %p124 = scmp.eq.s32.totalorder %s15, 0
      %p125 = por %p123, %p124
      %p126 = scmp.ne.s32.totalorder %s115, %s118
      %p127 = scmp.eq.s32.totalorder %s20, 1
      %p128 = por %p126, %p127
      %p129 = scmp.ne.s32.totalorder %s118, %s119
      %p130 = scmp.eq.s32.totalorder %s20, 0
      %p131 = por %p129, %p130
      %p132 = scmp.ne.s32.totalorder %s118, %s119
      %p133 = scmp.eq.s32.totalorder %s21, 1
      %p134 = por %p132, %p133
      %p136 = scmp.ne.s32.totalorder %s119, %s135
      %p137 = scmp.eq.s32.totalorder %s21, 0
      %p138 = por %p136, %p137
      %s139 = ssub.s32 %s22, %s34
      %p140 = scmp.eq.s32.totalorder %s139, 0
      %s142 = sadd.s32 %s141, 1
      %s143 = scalar_select %p140, %s141, %s142
      %p146 = pneg %p140
      %p147 = scmp.eq.s32.totalorder %s15, 1
      %p148 = por %p146, %p147
      %p149 = scmp.ne.s32.totalorder %s141, %s144
      %p150 = scmp.eq.s32.totalorder %s15, 0
      %p151 = por %p149, %p150
      %p152 = scmp.ne.s32.totalorder %s141, %s144
      %p153 = scmp.eq.s32.totalorder %s20, 1
      %p154 = por %p152, %p153
      %p155 = scmp.ne.s32.totalorder %s144, %s145
      %p156 = scmp.eq.s32.totalorder %s20, 0
      %p157 = por %p155, %p156
      %p158 = scmp.ne.s32.totalorder %s144, %s145
      %p159 = scmp.eq.s32.totalorder %s21, 1
      %p160 = por %p158, %p159
      %p162 = scmp.ne.s32.totalorder %s145, %s161
      %p163 = scmp.eq.s32.totalorder %s21, 0
      %p164 = por %p162, %p163
      %s165 = ssub.s32 %s23, %s30
      %p166 = scmp.eq.s32.totalorder %s165, 0
      %s168 = sadd.s32 %s167, 1
      %s169 = scalar_select %p166, %s167, %s168
      %p172 = pneg %p166
      %p173 = scmp.eq.s32.totalorder %s15, 1
      %p174 = por %p172, %p173
      %p175 = scmp.ne.s32.totalorder %s167, %s170
      %p176 = scmp.eq.s32.totalorder %s15, 0
      %p177 = por %p175, %p176
      %p178 = scmp.ne.s32.totalorder %s167, %s170
      %p179 = scmp.eq.s32.totalorder %s20, 1
      %p180 = por %p178, %p179
      %p181 = scmp.ne.s32.totalorder %s170, %s171
      %p182 = scmp.eq.s32.totalorder %s20, 0
      %p183 = por %p181, %p182
      %p184 = scmp.ne.s32.totalorder %s170, %s171
      %p185 = scmp.eq.s32.totalorder %s21, 1
      %p186 = por %p184, %p185
      %p188 = scmp.ne.s32.totalorder %s171, %s187
      %p189 = scmp.eq.s32.totalorder %s21, 0
      %p190 = por %p188, %p189
      %s191 = ssub.s32 %s22, %s34
      %p192 = scmp.eq.s32.totalorder %s191, 0
      %s194 = sadd.s32 %s193, 1
      %s195 = scalar_select %p192, %s193, %s194
      %p198 = pneg %p192
      %p199 = scmp.eq.s32.totalorder %s15, 1
      %p200 = por %p198, %p199
      %p201 = scmp.ne.s32.totalorder %s193, %s196
      %p202 = scmp.eq.s32.totalorder %s15, 0
      %p203 = por %p201, %p202
      %p204 = scmp.ne.s32.totalorder %s193, %s196
      %p205 = scmp.eq.s32.totalorder %s20, 1
      %p206 = por %p204, %p205
      %p207 = scmp.ne.s32.totalorder %s196, %s197
      %p208 = scmp.eq.s32.totalorder %s20, 0
      %p209 = por %p207, %p208
      %p210 = scmp.ne.s32.totalorder %s196, %s197
      %p211 = scmp.eq.s32.totalorder %s21, 1
      %p212 = por %p210, %p211
      %p214 = scmp.ne.s32.totalorder %s197, %s213
      %p215 = scmp.eq.s32.totalorder %s21, 0
      %p216 = por %p214, %p215
      %p217 = scmp.le.s32.totalorder 1, %s15
      %p218 = scmp.lt.s32.totalorder %s15, 3
      %p219 = pnand %p217, %p218
      %p220 = pneg %p219
      // Predicated region
      $region9: #{tpu_custom_call.1} parent=5 // pred_check
        _
      $region10: #{tpu_custom_call.1} parent=5 // pred_check_branch
        %222 = sbr.rel (%p219) target = $region12
      $region11: #{tpu_custom_call.1} parent=5 // pred_region
        %s223 = ssub.s32 %s15, 1
        // Predicated region
        $region13: #{tpu_custom_call.1} parent=11 // pred_check
          %p224 = pneg %p79
        $region14: #{tpu_custom_call.1} parent=11 // pred_check_branch
          %226 = sbr.rel (%p224) target = $region16
        $region15: #{tpu_custom_call.1} parent=11 // pred_region
          %s227 = smul.u32 2, %s25
          %229 = vsyncadd [#allocation5], 0
          %s230 = smul.addr %s227, 8
          %s231 = scalar_lea.hbm %s1, %s230
          %s232 = sshll.u32 %s231, 4
          %s233 = int_to_ptr.hbm [resolvable:$true] %s232
          %s234 = sshll.u32 [#allocation4], 4
          %s235 = int_to_ptr.vmem [resolvable:$true] %s234
          %240 = dma.hbm_to_vmem [thread:$0]  %s233, 256, %s235, [#allocation5], 128, 128, 8
        $region16: #{tpu_custom_call.1} parent=11 // pred_fallthru
          _
        // Predicated region
        $region17: #{tpu_custom_call.1} parent=11 // pred_check
          %p241 = pneg %p183
        $region18: #{tpu_custom_call.1} parent=11 // pred_check_branch
          %243 = sbr.rel (%p241) target = $region20
        $region19: #{tpu_custom_call.1} parent=11 // pred_region
          %p244 = scmp.lt.s32.totalorder %s25, 0
          %s245 = scalar_select %p244, %s25, 0
          %s246 = scalar_lea.vmem %s4, %s245
        $region20: #{tpu_custom_call.1} parent=11 // pred_fallthru
          _
      $region12: #{tpu_custom_call.1} parent=5 // pred_fallthru
        _
      %p247 = scmp.lt.s32.totalorder %s15, 2
      // Predicated region
      $region21: #{tpu_custom_call.1} parent=5 // pred_check
        %p248 = pneg %p247
      $region22: #{tpu_custom_call.1} parent=5 // pred_check_branch
        %250 = sbr.rel (%p248) target = $region24
      $region23: #{tpu_custom_call.1} parent=5 // pred_region
        // Predicated region
        $region25: #{tpu_custom_call.1} parent=23 // pred_check
          %p251 = pneg %p47
        $region26: #{tpu_custom_call.1} parent=23 // pred_check_branch
          %253 = sbr.rel (%p251) target = $region28
        $region27: #{tpu_custom_call.1} parent=23 // pred_region
          %p254 = scmp.lt.s32.totalorder %s22, 1
          %s255 = scalar_select %p254, %s22, 1
          %s256 = smul.addr %s255, 8
          %s257 = scalar_lea.vmem %s0, %s256
        $region28: #{tpu_custom_call.1} parent=23 // pred_fallthru
          _
        // Predicated region
        $region29: #{tpu_custom_call.1} parent=23 // pred_check
          %p258 = pneg %p125
        $region30: #{tpu_custom_call.1} parent=23 // pred_check_branch
          %260 = sbr.rel (%p258) target = $region32
        $region31: #{tpu_custom_call.1} parent=23 // pred_region
          %s261 = sand.u32 %s115, 1
          %s262 = scalar_lea.sflag [#allocation7], %s261
          %s263 = sand.u32 %s115, 1
          %s264 = smul.addr %s263, 8
          %s265 = scalar_lea.vmem [#allocation6], %s264
          %s266 = sadd.s32 %s22, 1
          %p267 = scmp.lt.s32.totalorder %s266, 0
          %s268 = ssub.s32 0, %s266
          %s269 = scalar_select %p267, %s268, %s266
          %s270 = sand.u32 %s269, 1
          %s271 = ssub.s32 0, %s270
          %s272 = scalar_select %p267, %s271, %s270
          %p273 = scmp.ne.s32.totalorder %s272, 0
          %p274 = scmp.lt.s32.totalorder %s272, 0
          %p275 = pnand %p274, %p273
          %p276 = pneg %p275
          %s277 = sadd.s32 %s272, 2
          %s278 = scalar_select %p276, %s277, %s272
          %280 = vsyncadd %s262, 0
          %s281 = smul.addr %s278, 8
          %s282 = scalar_lea.hbm %s2, %s281
          %s284 = sshll.u32 %s282, 4
          %s285 = int_to_ptr.hbm [resolvable:$true] %s284
          %s286 = sshll.u32 %s265, 4
          %s287 = int_to_ptr.vmem [resolvable:$true] %s286
          %289 = dma.hbm_to_vmem [thread:$0]  %s285, 128, %s287, %s262
        $region32: #{tpu_custom_call.1} parent=23 // pred_fallthru
          _
        // Predicated region
        $region33: #{tpu_custom_call.1} parent=23 // pred_check
          %p290 = pneg %p151
        $region34: #{tpu_custom_call.1} parent=23 // pred_check_branch
          %292 = sbr.rel (%p290) target = $region36
        $region35: #{tpu_custom_call.1} parent=23 // pred_region
          %p293 = scmp.lt.s32.totalorder %s22, 1
          %s294 = scalar_select %p293, %s22, 1
          %s295 = smul.addr %s294, 8
          %s296 = scalar_lea.vmem %s3, %s295
        $region36: #{tpu_custom_call.1} parent=23 // pred_fallthru
          _
      $region24: #{tpu_custom_call.1} parent=5 // pred_fallthru
        _
      %p297 = scmp.le.s32.totalorder 1, %s15
      %p298 = scmp.lt.s32.totalorder %s15, 3
      %p299 = pnand %p297, %p298
      %p300 = pneg %p299
      // Predicated region
      $region37: #{tpu_custom_call.1} parent=5 // pred_check
        _
      $region38: #{tpu_custom_call.1} parent=5 // pred_check_branch
        %302 = sbr.rel (%p299) target = $region40
      $region39: #{tpu_custom_call.1} parent=5 // pred_region
        %s303 = ssub.s32 %s15, 1
        // Predicated region
        $region41: #{tpu_custom_call.1} parent=39 // pred_check
          %p304 = pneg %p79
        $region42: #{tpu_custom_call.1} parent=39 // pred_check_branch
          %306 = sbr.rel (%p304) target = $region44
        $region43: #{tpu_custom_call.1} parent=39 // pred_region
          %308 = dma.done [#allocation5], 256
        $region44: #{tpu_custom_call.1} parent=39 // pred_fallthru
          _
        %s309 = sand.u32 %s118, 1
        %s310 = scalar_lea.sflag [#allocation7], %s309
        %s311 = sand.u32 %s118, 1
        %s312 = smul.addr %s311, 8
        %s313 = scalar_lea.vmem [#allocation6], %s312
        // Predicated region
        $region45: #{tpu_custom_call.1} parent=39 // pred_check
          %p314 = pneg %p131
        $region46: #{tpu_custom_call.1} parent=39 // pred_check_branch
          %316 = sbr.rel (%p314) target = $region48
        $region47: #{tpu_custom_call.1} parent=39 // pred_region
          %318 = dma.done %s310, 128
        $region48: #{tpu_custom_call.1} parent=39 // pred_fallthru
          _
        %p319 = scmp.lt.s32.totalorder %s24, 1
        %s320 = scalar_select %p319, %s24, 1
        %s321 = smul.addr %s320, 8
        %s322 = scalar_lea.vmem %s0, %s321
        %p323 = pneg %p53
        %p324 = pneg %p50
        %p325 = pneg %p79
        %p326 = pneg %p76
        %s327 = sand.u32 %s118, 1
        %s328 = scalar_lea.sflag [#allocation7], %s327
        %s329 = sand.u32 %s118, 1
        %s330 = smul.addr %s329, 8
        %s331 = scalar_lea.vmem [#allocation6], %s330
        %p332 = pneg %p131
        %p333 = pneg %p128
        %p334 = scmp.lt.s32.totalorder %s24, 1
        %s335 = scalar_select %p334, %s24, 1
        %s336 = smul.addr %s335, 8
        %s337 = scalar_lea.vmem %s3, %s336
        %p338 = pneg %p157
        %p339 = pneg %p154
        %p340 = scmp.lt.s32.totalorder %s25, 0
        %s341 = scalar_select %p340, %s25, 0
        %s342 = scalar_lea.vmem %s4, %s341
        %p343 = pneg %p183
        %p344 = pneg %p180
        %p345 = pneg %p209
        %p346 = pneg %p206
        %p347 = scmp.lt.s32.totalorder %s24, 1
        %s348 = scalar_select %p347, %s24, 1
        %s349 = smul.addr %s348, 8
        %s350 = scalar_lea.vmem %s5, %s349
        %p351 = scmp.lt.s32.totalorder %s24, 1
        %s352 = scalar_select %p351, %s24, 1
        %s353 = smul.addr %s352, 8
        %s354 = scalar_lea.vmem %s0, %s353
        %s355 = smul.u32 2, %s25
        %s356 = sadd.s32 %s24, 1
        %p357 = scmp.lt.s32.totalorder %s356, 0
        %s358 = ssub.s32 0, %s356
        %s359 = scalar_select %p357, %s358, %s356
        %s360 = sand.u32 %s359, 1
        %s361 = ssub.s32 0, %s360
        %s362 = scalar_select %p357, %s361, %s360
        %p363 = scmp.ne.s32.totalorder %s362, 0
        %p364 = scmp.lt.s32.totalorder %s362, 0
        %p365 = pnand %p364, %p363
        %p366 = pneg %p365
        %s367 = sadd.s32 %s362, 2
        %s368 = scalar_select %p366, %s367, %s362
        %p369 = scmp.lt.s32.totalorder %s24, 1
        %s370 = scalar_select %p369, %s24, 1
        %s371 = smul.addr %s370, 8
        %s372 = scalar_lea.vmem %s3, %s371
        %p373 = scmp.lt.s32.totalorder %s25, 0
        %s374 = scalar_select %p373, %s25, 0
        %s375 = scalar_lea.vmem %s4, %s374
        %p376 = scmp.lt.s32.totalorder %s24, 1
        %s377 = scalar_select %p376, %s24, 1
        %s378 = smul.addr %s377, 8
        %s379 = scalar_lea.vmem %s5, %s378
        %p380 = scmp.eq.s32.totalorder %s25, 0
        // Predicated region
        $region49: #{tpu_custom_call.1} parent=39 // pred_check
          %p381 = pneg %p380
        $region50: #{tpu_custom_call.1} parent=39 // pred_check_branch
          %383 = sbr.rel (%p381) target = $region52
        $region51: #{tpu_custom_call.1} parent=39 // pred_region
          %vm384 = vcmask 7168
          %385 = vst.msk [vmem:[#allocation2] sm:$0xff] %vm384, -1e+30
          %386 = vst.msk [vmem:[#allocation3] sm:$0xff] %vm384, 0.0
        $region52: #{tpu_custom_call.1} parent=39 // pred_fallthru
          _
        %v387 = vld [vmem:[%s354] sm:$0xff]
        %v388 = vmul.f32 %v387, 2.0
        %v389 = vld [vmem:[#allocation4] sm:$0xff]
        %v390 = vld [vmem:[#allocation4 + $0x8] sm:$0xff]
        %vm391 = vcmask 261120
        %v393 = vsel %vm391, %v388, 0
        %v396 = vsel %vm391, %v389, 0
        %v399 = vsel %vm391, %v390, 0
        %401 = vmatpush.xpose.msra.mxu0 0.0
        %402 = vmatpush.xpose.msra.mxu0 0.0
        %403 = vmatpush.xpose.msra.mxu0 0.0
        %404 = vmatpush.xpose.msra.mxu0 0.0
        %405 = vmatpush.xpose.msra.mxu0 0.0
        %406 = vmatpush.xpose.msra.mxu0 0.0
        %407 = vmatpush.xpose.msra.mxu0 0.0
        %408 = vmatpush.xpose.msra.mxu0 0.0
        %409 = vmatpush.xpose.msra.mxu0 0.0
        %410 = vmatpush.xpose.msra.mxu0 0.0
        %411 = vmatpush.xpose.msra.mxu0 0.0
        %412 = vmatpush.xpose.msra.mxu0 0.0
        %413 = vmatpush.xpose.msra.mxu0 0.0
        %414 = vmatpush.xpose.msra.mxu0 0.0
        %415 = vmatpush.xpose.msra.mxu0 %v399
        %416 = vmatpush.xpose.msra.mxu0 %v396
        %417 = vmatmul.f32.gmra.mxu0 %v393
        %v418 = vpop.f32.mrf.mxu0
        %v419 = vadd.f32 0.0, %v418
        %420 = vdwg.mxu0
        %s421 = smul.u32 %s24, 8
        %s422 = smul.u32 %s25, 16
        %v423 = vlaneseq
        %v424 = vshrl.u32 %v423, 7
        %v425 = vstv %s421
        %v426 = vadd.s32 %v424, %v425
        %v427 = vlaneseq
        %v428 = vand.u32 %v427, 127
        %v429 = vstv %s422
        %v430 = vadd.s32 %v428, %v429
        %v431 = vsub.s32 %v426, %v430
        %vm432 = vcmp.eq.s32.totalorder %v431, 0
        %v433 = vsel %vm432, -1e+30, %v419
        %v434 = vld [vmem:[#allocation2] sm:$0xff]
        %vm435 = vcmask 130048
        %v436 = vsel %vm435, %v433, -inf
        %437 = vmax.xlane.f32.xlu0 %v436
        %v438 = vpop.xlane.xlu0 %437
        %v439 = vmax.f32 %v434, %v438
        %v440 = vld [vmem:[#allocation3] sm:$0xff]
        %v441 = vsub.f32 %v434, %v439
        %v442 = vmul.f32 %v441, 1.442695
        %v443 = vpow.pop %v442
        %v444 = vmul.f32 %v440, %v443
        %446 = vset.pattern.permute.xlu0 0
        %447 = vperm.xlu0 %446, %v439
        %v448 = vpop.permute.xlu0 %447
        %v450 = vsub.f32 %v433, %v448
        %v451 = vmul.f32 %v450, 1.442695
        %v452 = vpow.pop %v451
        %v453 = vsel %vm435, %v452, 0.0
        %454 = vadd.xlane.f32.xlu0 %v453
        %v455 = vpop.xlane.xlu0 %454
        %v456 = vadd.f32 %v444, %v455
        %vm457 = vcmask 7168
        %458 = vst.msk [vmem:[#allocation3] sm:$0xff] %vm457, %v456
        %459 = vst.msk [vmem:[#allocation2] sm:$0xff] %vm457, %v439
        // Predicated region
        $region53: #{tpu_custom_call.1} parent=39 // pred_check
          %p460 = pneg %p380
        $region54: #{tpu_custom_call.1} parent=39 // pred_check_branch
          %462 = sbr.rel (%p460) target = $region56
        $region55: #{tpu_custom_call.1} parent=39 // pred_region
          %v463 = vld [vmem:[%s313] sm:$0xff]
          %v464 = vmul.f32 %v388, %v463
          %v465 = vsel %vm391, %v464, 0.0
          %466 = vadd.xlane.f32.xlu0 %v465
          %v467 = vpop.xlane.xlu0 %466
          %v468 = vld [vmem:[#allocation2] sm:$0xff]
          %v469 = vld [vmem:[#allocation3] sm:$0xff]
          %v470 = vlog2.pop %v469
          %v471 = vmul.f32 %v470, 0.6931472
          %v472 = vadd.f32 %v468, %v471
          %v473 = vsub.f32 %v472, %v467
          %474 = vst.msk [vmem:[%s379] sm:$0xff] %vm457, %v473
        $region56: #{tpu_custom_call.1} parent=39 // pred_fallthru
          _
        %p475 = scmp.lt.s32.totalorder %s24, 1
        %s476 = scalar_select %p475, %s24, 1
        %s477 = smul.addr %s476, 8
        %s478 = scalar_lea.vmem %s5, %s477
        // Predicated region
        $region57: #{tpu_custom_call.1} parent=39 // pred_check
          %p479 = pneg %p206
        $region58: #{tpu_custom_call.1} parent=39 // pred_check_branch
          %481 = sbr.rel (%p479) target = $region60
        $region59: #{tpu_custom_call.1} parent=39 // pred_region
          _
        $region60: #{tpu_custom_call.1} parent=39 // pred_fallthru
          _
      $region40: #{tpu_custom_call.1} parent=5 // pred_fallthru
        _
      %p482 = scmp.le.s32.totalorder 2, %s15
      // Predicated region
      $region61: #{tpu_custom_call.1} parent=5 // pred_check
        %p483 = pneg %p482
      $region62: #{tpu_custom_call.1} parent=5 // pred_check_branch
        %485 = sbr.rel (%p483) target = $region64
      $region63: #{tpu_custom_call.1} parent=5 // pred_region
        %s486 = ssub.s32 %s15, 2
        // Predicated region
        $region65: #{tpu_custom_call.1} parent=63 // pred_check
          %p487 = pneg %p212
        $region66: #{tpu_custom_call.1} parent=63 // pred_check_branch
          %489 = sbr.rel (%p487) target = $region68
        $region67: #{tpu_custom_call.1} parent=63 // pred_region
          %p490 = scmp.lt.s32.totalorder %s26, 1
          %s491 = scalar_select %p490, %s26, 1
          %s492 = smul.addr %s491, 8
          %s493 = scalar_lea.vmem %s5, %s492
        $region68: #{tpu_custom_call.1} parent=63 // pred_fallthru
          _
      $region64: #{tpu_custom_call.1} parent=5 // pred_fallthru
        _
    $region6: #{tpu_custom_call.1} parent=1 // loop_footer
      %s19 = sadd.s32 1, %s15
    $region7: #{tpu_custom_call.1} parent=1 // loop_footer_branch
      %14 = sbr.rel target = $region3
    $region8: #{tpu_custom_call.1} parent=1 // loop_exit
      _
    %494 = vsyncpa [#allocation5], 1
    %s495 = scalar_lea.sflag [#allocation5], 1
    %496 = vsyncpa %s495, 1
    %497 = vsyncpa [#allocation7], 1
    %s498 = scalar_lea.sflag [#allocation7], 1
    %499 = vsyncpa %s498, 1

</llo_original>
